<compile_context>
chip_gen: v5e
topology: v5e:2x2
jax: 0.10.0
libtpu: 0.0.40
codegen_flags: <defaults>
</compile_context>

<pallas_src>
import jax
import jax.numpy as jnp
from jax.experimental import pallas as pl
from jax.experimental.pallas import tpu as pltpu

NODE_DIM = 128   # src_feat width
PTD_DIM = 128    # ptd_proj output width
H1 = 128         # fc_1 output width
H2 = 64          # fc_2 output width
LANE = 128


def _round_up(x, m):
    return ((x + m - 1) // m) * m


def mlp_ptd_kernel(src_ref, ptd_ref, wbig_ref, vecs_ref, b3_ref, out_ref):
    src = src_ref[...]                      # [T, 128] f32
    ptd = ptd_ref[...]                      # [T, 1]   f32

    vecs = vecs_ref[...]                    # [8, 128] f32 packed small params
    ptd_w = vecs[0:1, :]
    ptd_b = vecs[1:2, :]
    b1 = vecs[2:3, :]
    b2 = vecs[3:4, :]                       # zero-padded 64 -> 128
    w3_row = vecs[4:5, :]                   # fc_3 weight as a row, zero-padded

    # VMEM-resident bf16 weight stack: [fc_1 src-half | fc_1 ptd-half | fc_2 padded]
    w1_src = wbig_ref[0:NODE_DIM, :]                                  # [128,128] bf16
    w1_ptd = wbig_ref[NODE_DIM:NODE_DIM + PTD_DIM, :]                 # [128,128] bf16
    w2 = wbig_ref[NODE_DIM + PTD_DIM:NODE_DIM + PTD_DIM + H1, :]      # [128,128] bf16

    # ptd_proj: Linear(1,128) is a broadcast multiply + add (VPU) + ReLU.
    # TODO(synk): nn.Dropout layers are identity here (inference / eval mode).
    ptd_embed = jnp.maximum(ptd * ptd_w + ptd_b, 0.0)                 # [T,128] f32

    # fc_1 on torch.cat([src, ptd_embed], 1): two tile-aligned K=128 sub-matmuls,
    # bf16 MXU inputs, f32 accumulation.
    h1 = (jnp.dot(src.astype(jnp.bfloat16), w1_src,
                  preferred_element_type=jnp.float32)
          + jnp.dot(ptd_embed.astype(jnp.bfloat16), w1_ptd,
                    preferred_element_type=jnp.float32)
          + b1)
    h1 = jnp.maximum(h1, 0.0)                                         # [T,128]

    # fc_2 (128 -> 64), zero-padded to a lane-dense 128-wide output.
    h2 = jnp.maximum(
        jnp.dot(h1.astype(jnp.bfloat16), w2,
                preferred_element_type=jnp.float32) + b2, 0.0)        # [T,128]

    # fc_3 (64 -> 1) off the MXU: VPU multiply + lane reduction
    # (padded lanes of h2 and w3_row are exactly zero, so this is exact).
    out = jnp.sum(h2 * w3_row, axis=-1, keepdims=True) + b3_ref[0, 0]
    out_ref[...] = out.astype(out_ref.dtype)


def init_params(key, node_dim=NODE_DIM, ptd_dim=PTD_DIM):
    """Weights in x @ W + b convention (W = torch nn.Linear.weight transposed)."""
    k0, k0b, k1, k2, k3 = jax.random.split(key, 5)

    def kaiming(k, fan_in, fan_out):
        return jax.random.normal(k, (fan_in, fan_out), jnp.float32) * (2.0 / fan_in) ** 0.5

    ptd_w = jax.random.uniform(k0, (1, ptd_dim), jnp.float32, -1.0, 1.0)
    ptd_b = jax.random.uniform(k0b, (1, ptd_dim), jnp.float32, -1.0, 1.0)
    w1 = kaiming(k1, node_dim + ptd_dim, H1)
    b1 = jnp.zeros((1, H1), jnp.float32)
    w2 = kaiming(k2, H1, H2)
    b2 = jnp.zeros((1, H2), jnp.float32)
    w3 = kaiming(k3, H2, 1)
    b3 = jnp.zeros((1, 1), jnp.float32)
    return (ptd_w, ptd_b, w1, b1, w2, b2, w3, b3)


def pack_params(params):
    """One-time host-side packing: bf16 weight stack + one [8,128] f32 vec slab."""
    ptd_w, ptd_b, w1, b1, w2, b2, w3, b3 = params
    w2_pad = jnp.pad(w2, ((0, 0), (0, LANE - H2)))                    # [128,128]
    wbig = jnp.concatenate(
        [w1[:NODE_DIM], w1[NODE_DIM:], w2_pad], axis=0).astype(jnp.bfloat16)  # [384,128]

    b2_pad = jnp.pad(b2, ((0, 0), (0, LANE - H2)))                    # [1,128]
    w3_row = jnp.pad(w3.T, ((0, 0), (0, LANE - H2)))                  # [1,128]
    vecs = jnp.concatenate(
        [ptd_w, ptd_b, b1, b2_pad, w3_row, jnp.zeros((3, LANE), jnp.float32)],
        axis=0).astype(jnp.float32)                                   # [8,128]
    return wbig, vecs, b3.astype(jnp.float32)


def mlp_ptd_forward(src_feat, ptd, wbig, vecs, b3, *, tile_b=512):
    if ptd.ndim == 1:
        ptd = ptd[:, None]
    B = src_feat.shape[0]

    tile_b = max(8, min(tile_b, _round_up(B, 8)))    # don't over-pad tiny batches
    padded_b = _round_up(B, tile_b)
    if padded_b != B:
        pad = padded_b - B
        src_feat = jnp.pad(src_feat, ((0, pad), (0, 0)))
        ptd = jnp.pad(ptd, ((0, pad), (0, 0)))

    grid = (padded_b // tile_b,)
    out = pl.pallas_call(
        mlp_ptd_kernel,
        out_shape=jax.ShapeDtypeStruct((padded_b, 1), jnp.float32),
        grid=grid,
        in_specs=[
            pl.BlockSpec((tile_b, NODE_DIM), lambda i: (i, 0)),              # src tile
            pl.BlockSpec((tile_b, 1), lambda i: (i, 0)),                     # ptd tile
            pl.BlockSpec((NODE_DIM + PTD_DIM + H1, LANE), lambda i: (0, 0)),  # resident weights
            pl.BlockSpec((8, LANE), lambda i: (0, 0)),                       # resident small params
            pl.BlockSpec(memory_space=pltpu.MemorySpace.SMEM),               # fc_3 bias scalar
        ],
        out_specs=pl.BlockSpec((tile_b, 1), lambda i: (i, 0)),
        compiler_params=pltpu.CompilerParams(
            dimension_semantics=("parallel",)),      # megacore sharding on v7x
    )(src_feat, ptd, wbig, vecs, b3)
    return out[:B, 0]                                # .squeeze(1)


def mlp_ptd_reference(src_feat, ptd, params):
    """Pure-JAX f32 reference mirroring the PyTorch forward in eval mode."""
    ptd_w, ptd_b, w1, b1, w2, b2, w3, b3 = params
    if ptd.ndim == 1:
        ptd = ptd[:, None]
    ptd_embed = jax.nn.relu(ptd @ ptd_w + ptd_b)
    x = jnp.concatenate([src_feat, ptd_embed], axis=1)
    x = jax.nn.relu(x @ w1 + b1)
    x = jax.nn.relu(x @ w2 + b2)
    out = x @ w3 + b3
    return out[:, 0]


if __name__ == "__main__":
    key = jax.random.PRNGKey(0)
    kp, ks, kt = jax.random.split(key, 3)

    B = 8
    params = init_params(kp)
    wbig, vecs, b3 = pack_params(params)

    src_feat = jax.random.normal(ks, (B, NODE_DIM), jnp.float32)
    ptd = jax.random.normal(kt, (B,), jnp.float32)       # 1-D, like the torch path

    out = mlp_ptd_forward(src_feat, ptd, wbig, vecs, b3)
    out = jax.block_until_ready(out)

    ref = mlp_ptd_reference(src_feat, ptd, params)
    assert out.shape == (B,)
    # bf16 matmul inputs -> loosened tolerance vs the f32 reference.
    assert jnp.allclose(out, ref, atol=5e-2, rtol=5e-2), (out, ref)

    print("KERNEL_OK")
</pallas_src>

<mosaic_0001>
module attributes {stable_mosaic.version = 11 : i64} {
  func.func @mlp_ptd_kernel(%arg0: i32, %arg1: memref<8x128xf32, #tpu.memory_space<vmem>>, %arg2: memref<8x1xf32, #tpu.memory_space<vmem>>, %arg3: memref<384x128xbf16, #tpu.memory_space<vmem>>, %arg4: memref<8x128xf32, #tpu.memory_space<vmem>>, %arg5: memref<1x1xf32, #tpu.memory_space<smem>>, %arg6: memref<8x1xf32, #tpu.memory_space<vmem>>) attributes {dimension_semantics = [#tpu.dimension_semantics<parallel>], iteration_bounds = array<i64: 1>, scalar_prefetch = 0 : i64, scratch_operands = 0 : i64, tpu.core_type = #tpu.core_type<tc>, window_params = [{transform_indices = @transform_0, window_bounds = array<i64: 8, 128>}, {transform_indices = @transform_1, window_bounds = array<i64: 8, 1>}, {pipeline_mode = #tpu.pipeline_mode<synchronous>, transform_indices = @transform_2, window_bounds = array<i64: 384, 128>}, {pipeline_mode = #tpu.pipeline_mode<synchronous>, transform_indices = @transform_3, window_bounds = array<i64: 8, 128>}, {transform_indices = @transform_4, window_bounds = array<i64: 1, 1>}, {transform_indices = @transform_5, window_bounds = array<i64: 8, 1>}]} {
    %c0 = arith.constant 0 : index
    %c0_0 = arith.constant 0 : index
    %0 = vector.load %arg1[%c0, %c0_0] : memref<8x128xf32, #tpu.memory_space<vmem>>, vector<8x128xf32>
    %c0_1 = arith.constant 0 : index
    %c0_2 = arith.constant 0 : index
    %1 = vector.load %arg2[%c0_1, %c0_2] : memref<8x1xf32, #tpu.memory_space<vmem>>, vector<8x1xf32>
    %c0_3 = arith.constant 0 : index
    %c0_4 = arith.constant 0 : index
    %2 = vector.load %arg4[%c0_3, %c0_4] : memref<8x128xf32, #tpu.memory_space<vmem>>, vector<8x128xf32>
    %3 = vector.extract_strided_slice %2 {offsets = [0, 0], sizes = [1, 128], strides = [1, 1]} : vector<8x128xf32> to vector<1x128xf32>
    %4 = vector.extract_strided_slice %2 {offsets = [1, 0], sizes = [1, 128], strides = [1, 1]} : vector<8x128xf32> to vector<1x128xf32>
    %5 = vector.extract_strided_slice %2 {offsets = [2, 0], sizes = [1, 128], strides = [1, 1]} : vector<8x128xf32> to vector<1x128xf32>
    %6 = vector.extract_strided_slice %2 {offsets = [3, 0], sizes = [1, 128], strides = [1, 1]} : vector<8x128xf32> to vector<1x128xf32>
    %7 = vector.extract_strided_slice %2 {offsets = [4, 0], sizes = [1, 128], strides = [1, 1]} : vector<8x128xf32> to vector<1x128xf32>
    %c0_5 = arith.constant 0 : index
    %c0_6 = arith.constant 0 : index
    %8 = vector.load %arg3[%c0_5, %c0_6] : memref<384x128xbf16, #tpu.memory_space<vmem>>, vector<128x128xbf16>
    %c128 = arith.constant 128 : index
    %c0_7 = arith.constant 0 : index
    %9 = vector.load %arg3[%c128, %c0_7] : memref<384x128xbf16, #tpu.memory_space<vmem>>, vector<128x128xbf16>
    %c256 = arith.constant 256 : index
    %c0_8 = arith.constant 0 : index
    %10 = vector.load %arg3[%c256, %c0_8] : memref<384x128xbf16, #tpu.memory_space<vmem>>, vector<128x128xbf16>
    %11 = vector.broadcast %1 : vector<8x1xf32> to vector<8x128xf32>
    %12 = vector.broadcast %3 : vector<1x128xf32> to vector<8x128xf32>
    %13 = arith.mulf %11, %12 : vector<8x128xf32>
    %14 = vector.broadcast %4 : vector<1x128xf32> to vector<8x128xf32>
    %15 = arith.addf %13, %14 : vector<8x128xf32>
    %cst = arith.constant 0.000000e+00 : f32
    %16 = vector.broadcast %cst : f32 to vector<8x128xf32>
    %17 = arith.maximumf %15, %16 : vector<8x128xf32>
    %18 = arith.truncf %0 : vector<8x128xf32> to vector<8x128xbf16>
    %cst_9 = arith.constant dense<0.000000e+00> : vector<8x128xf32>
    %19 = tpu.matmul %18, %8, %cst_9 {dimension_numbers = #tpu.dot_dimension_numbers<[1], [0], [0], [1], [0, 0, 1, 1], [], []>} : vector<8x128xbf16>, vector<128x128xbf16>, vector<8x128xf32> -> vector<8x128xf32>
    %20 = arith.truncf %17 : vector<8x128xf32> to vector<8x128xbf16>
    %cst_10 = arith.constant dense<0.000000e+00> : vector<8x128xf32>
    %21 = tpu.matmul %20, %9, %cst_10 {dimension_numbers = #tpu.dot_dimension_numbers<[1], [0], [0], [1], [0, 0, 1, 1], [], []>} : vector<8x128xbf16>, vector<128x128xbf16>, vector<8x128xf32> -> vector<8x128xf32>
    %22 = arith.addf %19, %21 : vector<8x128xf32>
    %23 = vector.broadcast %5 : vector<1x128xf32> to vector<8x128xf32>
    %24 = arith.addf %22, %23 : vector<8x128xf32>
    %cst_11 = arith.constant 0.000000e+00 : f32
    %25 = vector.broadcast %cst_11 : f32 to vector<8x128xf32>
    %26 = arith.maximumf %24, %25 : vector<8x128xf32>
    %27 = arith.truncf %26 : vector<8x128xf32> to vector<8x128xbf16>
    %cst_12 = arith.constant dense<0.000000e+00> : vector<8x128xf32>
    %28 = tpu.matmul %27, %10, %cst_12 {dimension_numbers = #tpu.dot_dimension_numbers<[1], [0], [0], [1], [0, 0, 1, 1], [], []>} : vector<8x128xbf16>, vector<128x128xbf16>, vector<8x128xf32> -> vector<8x128xf32>
    %29 = vector.broadcast %6 : vector<1x128xf32> to vector<8x128xf32>
    %30 = arith.addf %28, %29 : vector<8x128xf32>
    %cst_13 = arith.constant 0.000000e+00 : f32
    %31 = vector.broadcast %cst_13 : f32 to vector<8x128xf32>
    %32 = arith.maximumf %30, %31 : vector<8x128xf32>
    %33 = vector.broadcast %7 : vector<1x128xf32> to vector<8x128xf32>
    %34 = arith.mulf %32, %33 : vector<8x128xf32>
    %cst_14 = arith.constant dense<0.000000e+00> : vector<8xf32>
    %35 = vector.multi_reduction <add>, %34, %cst_14 [1] : vector<8x128xf32> to vector<8xf32>
    %36 = vector.shape_cast %35 : vector<8xf32> to vector<8x1xf32>
    %c0_15 = arith.constant 0 : index
    %c0_16 = arith.constant 0 : index
    %37 = memref.load %arg5[%c0_15, %c0_16] : memref<1x1xf32, #tpu.memory_space<smem>>
    %38 = vector.broadcast %37 : f32 to vector<8x1xf32>
    %39 = arith.addf %36, %38 : vector<8x1xf32>
    %c0_17 = arith.constant 0 : index
    %c0_18 = arith.constant 0 : index
    %40 = vector.load %arg6[%c0_17, %c0_18] : memref<8x1xf32, #tpu.memory_space<vmem>>, vector<8x1xf32>
    tpu.vector_store %arg6[%c0_17, %c0_18], %39 {strides = array<i32>} : memref<8x1xf32, #tpu.memory_space<vmem>>, vector<8x1xf32>,
    return
  }
  func.func @transform_0(%arg0: i32) -> (i32, i32) {
    %c0_i32 = arith.constant 0 : i32
    %c0_i32_0 = arith.constant 0 : i32
    return %arg0, %c0_i32 : i32, i32
  }
  func.func @transform_1(%arg0: i32) -> (i32, i32) {
    %c0_i32 = arith.constant 0 : i32
    %c0_i32_0 = arith.constant 0 : i32
    return %arg0, %c0_i32 : i32, i32
  }
  func.func @transform_2(%arg0: i32) -> (i32, i32) {
    %c0_i32 = arith.constant 0 : i32
    %c0_i32_0 = arith.constant 0 : i32
    %c0_i32_1 = arith.constant 0 : i32
    return %c0_i32, %c0_i32_0 : i32, i32
  }
  func.func @transform_3(%arg0: i32) -> (i32, i32) {
    %c0_i32 = arith.constant 0 : i32
    %c0_i32_0 = arith.constant 0 : i32
    %c0_i32_1 = arith.constant 0 : i32
    return %c0_i32, %c0_i32_0 : i32, i32
  }
  func.func @transform_4(%arg0: i32) -> (i32, i32) {
    %c0_i32 = arith.constant 0 : i32
    %c0_i32_0 = arith.constant 0 : i32
    %c0_i32_1 = arith.constant 0 : i32
    return %c0_i32, %c0_i32_0 : i32, i32
  }
  func.func @transform_5(%arg0: i32) -> (i32, i32) {
    %c0_i32 = arith.constant 0 : i32
    %c0_i32_0 = arith.constant 0 : i32
    return %arg0, %c0_i32 : i32, i32
  }
}

</mosaic_0001>

<llo_original>
// kernel: tpu_custom_call.1
$region0: #{tpu_custom_call.1}
  #allocation0 [shape = 'u32[]', space=smem, size = 0x4, offset = 0x4, fixed_abs, tag = 'smem constant byte address 0x4 - core index']
  #allocation1 [shape = 'u32[72,128]{1,0:T(1,128)}', space=vmem, size = 0x9000, scoped, tag = 'internal scratch']
  #allocation2 [shape = 'f32[1,1]{1,0:T(1,128)S(6)}', space=smem, size = 0x200, scoped, tag = 'scoped memory for tpu_custom_call.1']
  %s0 = inlined_call_operand.vmem [shape: f32[8,128], index: 0, kind: input, shape index: {}]
  %s1 = inlined_call_operand.vmem [shape: f32[8,1], index: 1, kind: input, shape index: {}]
  %s2 = inlined_call_operand.hbm [shape: bf16[384,128], index: 2, kind: input, shape index: {}]
  %s3 = inlined_call_operand.hbm [shape: f32[8,128], index: 3, kind: input, shape index: {}]
  %s4 = inlined_call_operand.<no memory space> [shape: f32[1,1], index: 4, kind: input, shape index: {}]
  %s5 = inlined_call_operand.vmem [shape: f32[8,1], index: 5, kind: output, shape index: {}]
  %s6 = sld [smem:[#allocation0]]
  $region38: #{tpu_custom_call.1} parent=0
    _
  %s8 = ssub.s32 1, %s6
  %s9 = scalar_select 0, %s8, %s6
  %10 = sst [smem:[#allocation2]] %s4
  $region1: #{tpu_custom_call.1} parent=0
    #allocation3 [shape = 'u8[98304]{0}', space=vmem, size = 0x18000, scoped, tag = 'input window, operand 2, single buffered']
    #allocation4 [shape = 's32[1]{0}', space=sflag, size = 0x4, scoped, tag = 'scoped memory for tpu_custom_call.1']
    #allocation5 [shape = 'u8[4096]{0}', space=vmem, size = 0x1000, scoped, tag = 'input window, operand 3, single buffered']
    #allocation6 [shape = 's32[1]{0}', space=sflag, size = 0x4, scoped, tag = 'scoped memory for tpu_custom_call.1']
    %11 = vsyncpa [#allocation4], 0
    %12 = vsyncpa [#allocation6], 0
    // Predicated region
    $region2: #{tpu_custom_call.1} parent=1 // pred_check
      _
    $region3: #{tpu_custom_call.1} parent=1 // pred_check_branch
      %14 = sbr.rel (0) target = $region5
    $region4: #{tpu_custom_call.1} parent=1 // pred_region
      _
    $region5: #{tpu_custom_call.1} parent=1 // pred_fallthru
      _
    // Predicated region
    $region6: #{tpu_custom_call.1} parent=1 // pred_check
      _
    $region7: #{tpu_custom_call.1} parent=1 // pred_check_branch
      %16 = sbr.rel (0) target = $region9
    $region8: #{tpu_custom_call.1} parent=1 // pred_region
      _
    $region9: #{tpu_custom_call.1} parent=1 // pred_fallthru
      _
    // Predicated region
    $region10: #{tpu_custom_call.1} parent=1 // pred_check
      _
    $region11: #{tpu_custom_call.1} parent=1 // pred_check_branch
      %18 = sbr.rel (0) target = $region13
    $region12: #{tpu_custom_call.1} parent=1 // pred_region
      %20 = vsyncadd [#allocation4], 0
      %s21 = sshll.u32 %s2, 4
      %s22 = int_to_ptr.hbm [resolvable:$true] %s21
      %s23 = sshll.u32 [#allocation3], 4
      %s24 = int_to_ptr.vmem [resolvable:$true] %s23
      %29 = dma.hbm_to_vmem [thread:$0]  %s22, 3072, %s24, [#allocation4], 64, 64, 4
    $region13: #{tpu_custom_call.1} parent=1 // pred_fallthru
      _
    // Predicated region
    $region14: #{tpu_custom_call.1} parent=1 // pred_check
      _
    $region15: #{tpu_custom_call.1} parent=1 // pred_check_branch
      %31 = sbr.rel (0) target = $region17
    $region16: #{tpu_custom_call.1} parent=1 // pred_region
      %33 = vsyncadd [#allocation6], 0
      %s35 = sshll.u32 %s3, 4
      %s36 = int_to_ptr.hbm [resolvable:$true] %s35
      %s37 = sshll.u32 [#allocation5], 4
      %s38 = int_to_ptr.vmem [resolvable:$true] %s37
      %40 = dma.hbm_to_vmem [thread:$0]  %s36, 128, %s38, [#allocation6]
    $region17: #{tpu_custom_call.1} parent=1 // pred_fallthru
      _
    // Predicated region
    $region18: #{tpu_custom_call.1} parent=1 // pred_check
      _
    $region19: #{tpu_custom_call.1} parent=1 // pred_check_branch
      %42 = sbr.rel (0) target = $region21
    $region20: #{tpu_custom_call.1} parent=1 // pred_region
      _
    $region21: #{tpu_custom_call.1} parent=1 // pred_fallthru
      _
    // Predicated region
    $region22: #{tpu_custom_call.1} parent=1 // pred_check
      _
    $region23: #{tpu_custom_call.1} parent=1 // pred_check_branch
      %44 = sbr.rel (0) target = $region25
    $region24: #{tpu_custom_call.1} parent=1 // pred_region
      %46 = dma.done [#allocation4], 3072
    $region25: #{tpu_custom_call.1} parent=1 // pred_fallthru
      _
    // Predicated region
    $region26: #{tpu_custom_call.1} parent=1 // pred_check
      _
    $region27: #{tpu_custom_call.1} parent=1 // pred_check_branch
      %48 = sbr.rel (0) target = $region29
    $region28: #{tpu_custom_call.1} parent=1 // pred_region
      %50 = dma.done [#allocation6], 128
    $region29: #{tpu_custom_call.1} parent=1 // pred_fallthru
      _
    %v51 = vld [vmem:[%s0] sm:$0xff]
    %v52 = vld [vmem:[%s1] sm:$0xff]
    %v53 = vld [vmem:[#allocation5] sm:$0xff]
    %v54 = vld [vmem:[#allocation3] sm:$0xf]
    %v55 = vld [vmem:[#allocation3 + $0x4] sm:$0xf]
    %v56 = vld [vmem:[#allocation3 + $0x8] sm:$0xf]
    %v57 = vld [vmem:[#allocation3 + $0xc] sm:$0xf]
    %v58 = vld [vmem:[#allocation3 + $0x10] sm:$0xf]
    %v59 = vld [vmem:[#allocation3 + $0x14] sm:$0xf]
    %v60 = vld [vmem:[#allocation3 + $0x18] sm:$0xf]
    %v61 = vld [vmem:[#allocation3 + $0x1c] sm:$0xf]
    %v62 = vld [vmem:[#allocation3 + $0x20] sm:$0xf]
    %v63 = vld [vmem:[#allocation3 + $0x24] sm:$0xf]
    %v64 = vld [vmem:[#allocation3 + $0x28] sm:$0xf]
    %v65 = vld [vmem:[#allocation3 + $0x2c] sm:$0xf]
    %v66 = vld [vmem:[#allocation3 + $0x30] sm:$0xf]
    %v67 = vld [vmem:[#allocation3 + $0x34] sm:$0xf]
    %v68 = vld [vmem:[#allocation3 + $0x38] sm:$0xf]
    %v69 = vld [vmem:[#allocation3 + $0x3c] sm:$0xf]
    %v70 = vld [vmem:[#allocation3 + $0x40] sm:$0xf]
    %v71 = vld [vmem:[#allocation3 + $0x44] sm:$0xf]
    %v72 = vld [vmem:[#allocation3 + $0x48] sm:$0xf]
    %v73 = vld [vmem:[#allocation3 + $0x4c] sm:$0xf]
    %v74 = vld [vmem:[#allocation3 + $0x50] sm:$0xf]
    %v75 = vld [vmem:[#allocation3 + $0x54] sm:$0xf]
    %v76 = vld [vmem:[#allocation3 + $0x58] sm:$0xf]
    %v77 = vld [vmem:[#allocation3 + $0x5c] sm:$0xf]
    %v78 = vld [vmem:[#allocation3 + $0x60] sm:$0xf]
    %v79 = vld [vmem:[#allocation3 + $0x64] sm:$0xf]
    %v80 = vld [vmem:[#allocation3 + $0x68] sm:$0xf]
    %v81 = vld [vmem:[#allocation3 + $0x6c] sm:$0xf]
    %v82 = vld [vmem:[#allocation3 + $0x70] sm:$0xf]
    %v83 = vld [vmem:[#allocation3 + $0x74] sm:$0xf]
    %v84 = vld [vmem:[#allocation3 + $0x78] sm:$0xf]
    %v85 = vld [vmem:[#allocation3 + $0x7c] sm:$0xf]
    %v86 = vld [vmem:[#allocation3 + $0x80] sm:$0xf]
    %v87 = vld [vmem:[#allocation3 + $0x84] sm:$0xf]
    %v88 = vld [vmem:[#allocation3 + $0x88] sm:$0xf]
    %v89 = vld [vmem:[#allocation3 + $0x8c] sm:$0xf]
    %v90 = vld [vmem:[#allocation3 + $0x90] sm:$0xf]
    %v91 = vld [vmem:[#allocation3 + $0x94] sm:$0xf]
    %v92 = vld [vmem:[#allocation3 + $0x98] sm:$0xf]
    %v93 = vld [vmem:[#allocation3 + $0x9c] sm:$0xf]
    %v94 = vld [vmem:[#allocation3 + $0xa0] sm:$0xf]
    %v95 = vld [vmem:[#allocation3 + $0xa4] sm:$0xf]
    %v96 = vld [vmem:[#allocation3 + $0xa8] sm:$0xf]
    %v97 = vld [vmem:[#allocation3 + $0xac] sm:$0xf]
    %v98 = vld [vmem:[#allocation3 + $0xb0] sm:$0xf]
    %v99 = vld [vmem:[#allocation3 + $0xb4] sm:$0xf]
    %v100 = vld [vmem:[#allocation3 + $0xb8] sm:$0xf]
    %v101 = vld [vmem:[#allocation3 + $0xbc] sm:$0xf]
    %103 = vset.pattern.permute.xlu0 0
    %104 = vperm.xlu0 %103, %v52
    %v105 = vpop.permute.xlu0 %104
    %v107 = vperm.slane %v53, 0
    %v108 = vmul.f32 %v105, %v107
    %v109 = vperm.slane %v53, 1
    %v110 = vadd.f32 %v108, %v109
    %v111 = vmax.f32 %v110, 0.0
    %v112 = vpack.c.bf16 %v51, %v51
    %v113 = vpack.c.bf16 %v111, %v111
    %v130 = vunpack.c.l.b16 %v70
    %v131 = vunpack.c.l.b16 %v71
    %v132 = vunpack.c.l.b16 %v72
    %v133 = vunpack.c.l.b16 %v73
    %v134 = vunpack.c.l.b16 %v74
    %v135 = vunpack.c.l.b16 %v75
    %v136 = vunpack.c.l.b16 %v76
    %v137 = vunpack.c.l.b16 %v77
    %v138 = vunpack.c.l.b16 %v78
    %v139 = vunpack.c.l.b16 %v79
    %v140 = vunpack.c.l.b16 %v80
    %v141 = vunpack.c.l.b16 %v81
    %v142 = vunpack.c.l.b16 %v82
    %v143 = vunpack.c.l.b16 %v83
    %v144 = vunpack.c.l.b16 %v84
    %v145 = vunpack.c.l.b16 %v85
    %v146 = vpack.c.b16 %v131, %v130
    %v147 = vpack.c.b16 %v133, %v132
    %v148 = vpack.c.b16 %v135, %v134
    %v149 = vpack.c.b16 %v137, %v136
    %v150 = vpack.c.b16 %v139, %v138
    %v151 = vpack.c.b16 %v141, %v140
    %v152 = vpack.c.b16 %v143, %v142
    %v153 = vpack.c.b16 %v145, %v144
    %162 = vmatpush.bf16.msra.mxu0 %v153
    %163 = vmatpush.bf16.msra.mxu0 %v152
    %164 = vmatpush.bf16.msra.mxu0 %v151
    %165 = vmatpush.bf16.msra.mxu0 %v150
    %166 = vmatpush.bf16.msra.mxu0 %v149
    %167 = vmatpush.bf16.msra.mxu0 %v148
    %168 = vmatpush.bf16.msra.mxu0 %v147
    %169 = vmatpush.bf16.msra.mxu0 %v146
    %170 = vmatmul.bf16.gmra.mxu0 %v113
    %v171 = vpop.f32.mrf.mxu0
    %v172 = vadd.f32 0.0, %v171
    %v173 = vpop.f32.mrf.mxu0
    %174 = vdwg.mxu0
    %v191 = vunpack.c.l.b16 %v54
    %v192 = vunpack.c.l.b16 %v55
    %v193 = vunpack.c.l.b16 %v56
    %v194 = vunpack.c.l.b16 %v57
    %v195 = vunpack.c.l.b16 %v58
    %v196 = vunpack.c.l.b16 %v59
    %v197 = vunpack.c.l.b16 %v60
    %v198 = vunpack.c.l.b16 %v61
    %v199 = vunpack.c.l.b16 %v62
    %v200 = vunpack.c.l.b16 %v63
    %v201 = vunpack.c.l.b16 %v64
    %v202 = vunpack.c.l.b16 %v65
    %v203 = vunpack.c.l.b16 %v66
    %v204 = vunpack.c.l.b16 %v67
    %v205 = vunpack.c.l.b16 %v68
    %v206 = vunpack.c.l.b16 %v69
    %v207 = vpack.c.b16 %v192, %v191
    %v208 = vpack.c.b16 %v194, %v193
    %v209 = vpack.c.b16 %v196, %v195
    %v210 = vpack.c.b16 %v198, %v197
    %v211 = vpack.c.b16 %v200, %v199
    %v212 = vpack.c.b16 %v202, %v201
    %v213 = vpack.c.b16 %v204, %v203
    %v214 = vpack.c.b16 %v206, %v205
    %223 = vmatpush.bf16.msra.mxu0 %v214
    %224 = vmatpush.bf16.msra.mxu0 %v213
    %225 = vmatpush.bf16.msra.mxu0 %v212
    %226 = vmatpush.bf16.msra.mxu0 %v211
    %227 = vmatpush.bf16.msra.mxu0 %v210
    %228 = vmatpush.bf16.msra.mxu0 %v209
    %229 = vmatpush.bf16.msra.mxu0 %v208
    %230 = vmatpush.bf16.msra.mxu0 %v207
    %231 = vmatmul.bf16.gmra.mxu0 %v112
    %v232 = vpop.f32.mrf.mxu0
    %v233 = vadd.f32 %v172, %v232
    %v234 = vpop.f32.mrf.mxu0
    %235 = vdwg.mxu0
    %v236 = vperm.slane %v53, 2
    %v237 = vadd.f32 %v233, %v236
    %v238 = vmax.f32 %v237, 0.0
    %v239 = vpack.c.bf16 %v238, %v238
    %v240 = vperm.slane %v53, 3
    %v257 = vunpack.c.l.b16 %v86
    %v258 = vunpack.c.l.b16 %v87
    %v259 = vunpack.c.l.b16 %v88
    %v260 = vunpack.c.l.b16 %v89
    %v261 = vunpack.c.l.b16 %v90
    %v262 = vunpack.c.l.b16 %v91
    %v263 = vunpack.c.l.b16 %v92
    %v264 = vunpack.c.l.b16 %v93
    %v265 = vunpack.c.l.b16 %v94
    %v266 = vunpack.c.l.b16 %v95
    %v267 = vunpack.c.l.b16 %v96
    %v268 = vunpack.c.l.b16 %v97
    %v269 = vunpack.c.l.b16 %v98
    %v270 = vunpack.c.l.b16 %v99
    %v271 = vunpack.c.l.b16 %v100
    %v272 = vunpack.c.l.b16 %v101
    %v273 = vpack.c.b16 %v258, %v257
    %v274 = vpack.c.b16 %v260, %v259
    %v275 = vpack.c.b16 %v262, %v261
    %v276 = vpack.c.b16 %v264, %v263
    %v277 = vpack.c.b16 %v266, %v265
    %v278 = vpack.c.b16 %v268, %v267
    %v279 = vpack.c.b16 %v270, %v269
    %v280 = vpack.c.b16 %v272, %v271
    %289 = vmatpush.bf16.msra.mxu0 %v280
    %290 = vmatpush.bf16.msra.mxu0 %v279
    %291 = vmatpush.bf16.msra.mxu0 %v278
    %292 = vmatpush.bf16.msra.mxu0 %v277
    %293 = vmatpush.bf16.msra.mxu0 %v276
    %294 = vmatpush.bf16.msra.mxu0 %v275
    %295 = vmatpush.bf16.msra.mxu0 %v274
    %296 = vmatpush.bf16.msra.mxu0 %v273
    %297 = vmatmul.bf16.gmra.mxu0 %v239
    %v298 = vpop.f32.mrf.mxu0
    %v299 = vadd.f32 %v240, %v298
    %v300 = vpop.f32.mrf.mxu0
    %301 = vdwg.mxu0
    %v302 = vmax.f32 %v299, 0.0
    %v303 = vperm.slane %v53, 4
    %v304 = vmul.f32 %v302, %v303
    %305 = vadd.xlane.f32.xlu0 %v304
    %v306 = vpop.xlane.xlu0 %305
    %s307 = sld [smem:[#allocation2]]
    %v308 = vstv %s307
    %v309 = vadd.f32 %v306, %v308
    %vm310 = vcmask 7168
    %311 = vst.msk [vmem:[%s5] sm:$0xff] %vm310, %v309
    // Predicated region
    $region30: #{tpu_custom_call.1} parent=1 // pred_check
      _
    $region31: #{tpu_custom_call.1} parent=1 // pred_check_branch
      %313 = sbr.rel (0) target = $region33
    $region32: #{tpu_custom_call.1} parent=1 // pred_region
      _
    $region33: #{tpu_custom_call.1} parent=1 // pred_fallthru
      _
    // Predicated region
    $region34: #{tpu_custom_call.1} parent=1 // pred_check
      _
    $region35: #{tpu_custom_call.1} parent=1 // pred_check_branch
      %315 = sbr.rel (0) target = $region37
    $region36: #{tpu_custom_call.1} parent=1 // pred_region
      _
    $region37: #{tpu_custom_call.1} parent=1 // pred_fallthru
      _
    %316 = vsyncpa [#allocation4], 1
    %317 = vsyncpa [#allocation6], 1

</llo_original>
